<compile_context>
chip_gen: v7x
topology: tpu7x:2x2x1
jax: 0.10.0
libtpu: 0.0.40
codegen_flags: <defaults>
</compile_context>

<pallas_src>
import functools

import jax
import jax.numpy as jnp
from jax.experimental import pallas as pl
from jax.experimental.pallas import tpu as pltpu


def _gram_kernel(x_ref, g_ref, *, inv_norm, hw, tk, num_k, kp, split_k,
                 mask_tail, cast_to_bf16):
    # x_ref: (c, tk) tile for (partial p, batch b, hw-tile k).
    # g_ref: (c, c) f32 partial-gram slab resident across (b, k) for fixed p.
    p = pl.program_id(0)
    b = pl.program_id(1)
    k = pl.program_id(2)

    @pl.when(jnp.logical_and(b == 0, k == 0))
    def _():
        g_ref[...] = jnp.zeros_like(g_ref)

    m = x_ref[...]
    if cast_to_bf16 and m.dtype == jnp.float32:
        m = m.astype(jnp.bfloat16)          # opt-in: MXU is bf16-native
    elif m.dtype != jnp.float32 and m.dtype != jnp.bfloat16:
        m = m.astype(jnp.float32)           # dtypes the MXU can't take natively

    def accum(tile):
        # Contract the lane axis of both operands -> (c, c); same pattern as
        # flash-attention q@k^T.  f32 accumulation straight into g_ref.
        g_ref[...] += jax.lax.dot_general(
            tile, tile,
            dimension_numbers=(((1,), (1,)), ((), ())),
            preferred_element_type=jnp.float32,
        )

    if not mask_tail:
        accum(m)
    else:
        # Only the globally-last hw tile is ragged; keep the iota/compare/
        # select off the hot path by gating it with pl.when.
        global_k = p * kp + k if split_k else k
        is_tail = global_k == num_k - 1

        @pl.when(jnp.logical_not(is_tail))
        def _():
            accum(m)

        @pl.when(is_tail)
        def _():
            col = (num_k - 1) * tk + jax.lax.broadcasted_iota(
                jnp.int32, m.shape, 1)
            # Select (not arithmetic masking): OOB lanes may hold garbage.
            accum(jnp.where(col < hw, m, jnp.zeros_like(m)))

    @pl.when(jnp.logical_and(b == pl.num_programs(1) - 1,
                             k == pl.num_programs(2) - 1))
    def _():
        g_ref[...] = g_ref[...] * inv_norm


def _choose_tk(c, itemsize):
    """Lane-tile width: ~2 MiB per input block, double-buffered cap ~16 MiB."""
    target = 2 << 20
    in_cap = 16 << 20
    tk = target // max(1, c * itemsize)
    tk = min(tk, in_cap // max(1, 2 * c * itemsize))
    return max(128, (tk // 128) * 128)


def gram_matrix_patches(x, *, tk=None, cast_to_bf16=False):
    """x: (n, c, h, w). Returns (1, c, c) gram matrix matching the PyTorch module."""
    n, c, h, w = x.shape
    hw = h * w
    xr = x.reshape(n, c, hw)                 # free contiguous reshape
    itemsize = jnp.dtype(x.dtype).itemsize

    if tk is None:
        tk = _choose_tk(c, itemsize)
    if hw <= tk:
        tk_eff = hw                          # full-dim block: always legal
    else:
        tk_eff = max(128, (tk // 128) * 128)
    num_k = pl.cdiv(hw, tk_eff)
    mask_tail = (hw % tk_eff) != 0

    # 2-TC reduction split with per-partial output slabs (never mark a
    # shared-accumulator axis "parallel").
    if num_k >= 2 and num_k % 2 == 0:
        n_split, split_k, kp = 2, True, num_k // 2
        in_map = lambda p, b, k, _kp=kp: (b, 0, p * _kp + k)
        grid = (2, n, kp)
    elif n >= 2 and n % 2 == 0:
        n_split, split_k, kp = 2, False, num_k
        nb = n // 2
        in_map = lambda p, b, k, _nb=nb: (p * _nb + b, 0, k)
        grid = (2, nb, num_k)
    else:
        n_split, split_k, kp = 1, False, num_k
        in_map = lambda p, b, k: (b, 0, k)
        grid = (1, n, num_k)

    inv_norm = 1.0 / float(n * h * w * c)

    # Per-generation VMEM budgeting: raise the scoped limit only when the
    # working set (double-buffered input + double-buffered f32 accumulator)
    # needs it; cap below v7x's 64 MiB/TC physical.
    needed = 2 * c * tk_eff * itemsize + 2 * c * c * 4
    cp_kwargs = dict(dimension_semantics=("parallel", "arbitrary", "arbitrary"))
    if needed > (12 << 20):
        cp_kwargs["vmem_limit_bytes"] = int(min(needed + (8 << 20), 48 << 20))

    kernel = functools.partial(
        _gram_kernel, inv_norm=inv_norm, hw=hw, tk=tk_eff, num_k=num_k,
        kp=kp, split_k=split_k, mask_tail=mask_tail, cast_to_bf16=cast_to_bf16)

    partials = pl.pallas_call(
        kernel,
        out_shape=jax.ShapeDtypeStruct((n_split, c, c), jnp.float32),
        grid_spec=pltpu.PrefetchScalarGridSpec(
            num_scalar_prefetch=0,
            grid=grid,
            in_specs=[pl.BlockSpec((pl.Squeezed(), c, tk_eff), in_map)],
            out_specs=pl.BlockSpec((pl.Squeezed(), c, c),
                                   lambda p, b, k: (p, 0, 0)),
        ),
        compiler_params=pltpu.CompilerParams(**cp_kwargs),
    )(xr)

    G = partials[0] if n_split == 1 else jnp.sum(partials, axis=0)
    return G.astype(x.dtype)[None, :, :]     # (1, c, c)


def _ref(x):
    n, c, h, w = x.shape
    M = jnp.transpose(x, (1, 0, 2, 3)).reshape(c, n * h * w)
    return (M @ M.T)[None] / (n * h * w * c)


if __name__ == "__main__":
    key = jax.random.PRNGKey(0)

    # 1) Module-implied small shape: exercises the batch-split (n even) path.
    n, c, h, w = 2, 4, 16, 16
    x = jax.random.normal(key, (n, c, h, w), dtype=jnp.float32)
    G = jax.block_until_ready(gram_matrix_patches(x))
    assert G.shape == (1, c, c), G.shape
    assert jnp.allclose(G, _ref(x), atol=1e-5, rtol=1e-5)

    # 2) Multi-tile + ragged tail, no split (num_k=3 odd, n=1).
    x2 = jax.random.normal(jax.random.PRNGKey(0), (1, 8, 16, 20), jnp.float32)
    G2 = jax.block_until_ready(gram_matrix_patches(x2, tk=128))
    assert jnp.allclose(G2, _ref(x2), atol=1e-5, rtol=1e-5)

    # 3) hw-tile split (num_k=4 even) + ragged tail on the last partial.
    x3 = jax.random.normal(jax.random.PRNGKey(0), (1, 8, 16, 28), jnp.float32)
    G3 = jax.block_until_ready(gram_matrix_patches(x3, tk=128))
    assert jnp.allclose(G3, _ref(x3), atol=1e-5, rtol=1e-5)

    print("KERNEL_OK")
</pallas_src>

<mosaic_0001>
module attributes {stable_mosaic.version = 11 : i64} {
  func.func @_gram_kernel(%arg0: i32, %arg1: i32, %arg2: i32, %arg3: memref<1x4x256xf32, #tpu.memory_space<vmem>>, %arg4: memref<1x4x4xf32, #tpu.memory_space<vmem>>) attributes {dimension_semantics = [#tpu.dimension_semantics<parallel>, #tpu.dimension_semantics<arbitrary>, #tpu.dimension_semantics<arbitrary>], iteration_bounds = array<i64: 2, 1, 1>, scalar_prefetch = 0 : i64, scratch_operands = 0 : i64, tpu.core_type = #tpu.core_type<tc>, window_params = [{transform_indices = @transform_0, window_bounds = array<i64: 1, 4, 256>}, {transform_indices = @transform_1, window_bounds = array<i64: 1, 4, 4>}]} {
    %c0_i32 = arith.constant 0 : i32
    %0 = arith.cmpi eq, %arg1, %c0_i32 : i32
    %c0_i32_0 = arith.constant 0 : i32
    %1 = arith.cmpi eq, %arg2, %c0_i32_0 : i32
    %2 = arith.andi %0, %1 : i1
    %3 = arith.extui %2 : i1 to i32
    %c0_i32_1 = arith.constant 0 : i32
    %4 = arith.cmpi ne, %3, %c0_i32_1 : i32
    scf.if %4 {
      %cst_13 = arith.constant 0.000000e+00 : f32
      %19 = vector.broadcast %cst_13 : f32 to vector<4x4xf32>
      %c0_14 = arith.constant 0 : index
      %c0_15 = arith.constant 0 : index
      %c0_16 = arith.constant 0 : index
      %20 = vector.load %arg4[%c0_14, %c0_15, %c0_16] : memref<1x4x4xf32, #tpu.memory_space<vmem>>, vector<1x4x4xf32>
      %21 = vector.shape_cast %20 : vector<1x4x4xf32> to vector<4x4xf32>
      %22 = vector.shape_cast %19 : vector<4x4xf32> to vector<1x4x4xf32>
      tpu.vector_store %arg4[%c0_14, %c0_15, %c0_16], %22 {strides = array<i32>} : memref<1x4x4xf32, #tpu.memory_space<vmem>>, vector<1x4x4xf32>,
    } else {
    }
    %c0 = arith.constant 0 : index
    %c0_2 = arith.constant 0 : index
    %c0_3 = arith.constant 0 : index
    %5 = vector.load %arg3[%c0, %c0_2, %c0_3] : memref<1x4x256xf32, #tpu.memory_space<vmem>>, vector<1x4x256xf32>
    %6 = vector.shape_cast %5 : vector<1x4x256xf32> to vector<4x256xf32>
    %c0_4 = arith.constant 0 : index
    %c0_5 = arith.constant 0 : index
    %c0_6 = arith.constant 0 : index
    %7 = vector.load %arg4[%c0_4, %c0_5, %c0_6] : memref<1x4x4xf32, #tpu.memory_space<vmem>>, vector<1x4x4xf32>
    %8 = vector.shape_cast %7 : vector<1x4x4xf32> to vector<4x4xf32>
    %cst = arith.constant dense<0.000000e+00> : vector<4x4xf32>
    %9 = tpu.matmul %6, %6, %cst {dimension_numbers = #tpu.dot_dimension_numbers<[1], [1], [0], [0], [0, 0, 1, 0], [], []>} : vector<4x256xf32>, vector<4x256xf32>, vector<4x4xf32> -> vector<4x4xf32>
    %10 = arith.addf %8, %9 : vector<4x4xf32>
    %c0_7 = arith.constant 0 : index
    %c0_8 = arith.constant 0 : index
    %c0_9 = arith.constant 0 : index
    %11 = vector.load %arg4[%c0_7, %c0_8, %c0_9] : memref<1x4x4xf32, #tpu.memory_space<vmem>>, vector<1x4x4xf32>
    %12 = vector.shape_cast %11 : vector<1x4x4xf32> to vector<4x4xf32>
    %13 = vector.shape_cast %10 : vector<4x4xf32> to vector<1x4x4xf32>
    tpu.vector_store %arg4[%c0_7, %c0_8, %c0_9], %13 {strides = array<i32>} : memref<1x4x4xf32, #tpu.memory_space<vmem>>, vector<1x4x4xf32>,
    %c0_i32_10 = arith.constant 0 : i32
    %14 = arith.cmpi eq, %arg1, %c0_i32_10 : i32
    %c0_i32_11 = arith.constant 0 : i32
    %15 = arith.cmpi eq, %arg2, %c0_i32_11 : i32
    %16 = arith.andi %14, %15 : i1
    %17 = arith.extui %16 : i1 to i32
    %c0_i32_12 = arith.constant 0 : i32
    %18 = arith.cmpi ne, %17, %c0_i32_12 : i32
    scf.if %18 {
      %c0_13 = arith.constant 0 : index
      %c0_14 = arith.constant 0 : index
      %c0_15 = arith.constant 0 : index
      %19 = vector.load %arg4[%c0_13, %c0_14, %c0_15] : memref<1x4x4xf32, #tpu.memory_space<vmem>>, vector<1x4x4xf32>
      %20 = vector.shape_cast %19 : vector<1x4x4xf32> to vector<4x4xf32>
      %cst_16 = arith.constant 4.8828125E-4 : f32
      %21 = vector.broadcast %cst_16 : f32 to vector<4x4xf32>
      %22 = arith.mulf %20, %21 : vector<4x4xf32>
      %c0_17 = arith.constant 0 : index
      %c0_18 = arith.constant 0 : index
      %c0_19 = arith.constant 0 : index
      %23 = vector.load %arg4[%c0_17, %c0_18, %c0_19] : memref<1x4x4xf32, #tpu.memory_space<vmem>>, vector<1x4x4xf32>
      %24 = vector.shape_cast %23 : vector<1x4x4xf32> to vector<4x4xf32>
      %25 = vector.shape_cast %22 : vector<4x4xf32> to vector<1x4x4xf32>
      tpu.vector_store %arg4[%c0_17, %c0_18, %c0_19], %25 {strides = array<i32>} : memref<1x4x4xf32, #tpu.memory_space<vmem>>, vector<1x4x4xf32>,
    } else {
    }
    return
  }
  func.func @transform_0(%arg0: i32, %arg1: i32, %arg2: i32) -> (i32, i32, i32) {
    %c1_i32 = arith.constant 1 : i32
    %0 = arith.muli %arg0, %c1_i32 : i32
    %1 = arith.addi %0, %arg1 : i32
    %c0_i32 = arith.constant 0 : i32
    %c0_i32_0 = arith.constant 0 : i32
    return %1, %c0_i32, %arg2 : i32, i32, i32
  }
  func.func @transform_1(%arg0: i32, %arg1: i32, %arg2: i32) -> (i32, i32, i32) {
    %c0_i32 = arith.constant 0 : i32
    %c0_i32_0 = arith.constant 0 : i32
    %c0_i32_1 = arith.constant 0 : i32
    return %arg0, %c0_i32, %c0_i32_0 : i32, i32, i32
  }
}

</mosaic_0001>

<llo_original>
// kernel: tpu_custom_call.1
$region0: #{tpu_custom_call.1}
  #allocation0 [shape = 'u32[]', space=smem, size = 0x4, offset = 0x4, fixed_abs, tag = 'smem constant byte address 0x4 - core index']
  #allocation1 [shape = 'u32[144,128]{1,0:T(1,128)}', space=vmem, size = 0x12000, scoped, tag = 'internal scratch']
  %s0 = inlined_call_operand.hbm [shape: f32[2,4,256], index: 0, kind: input, shape index: {}]
  %s1 = inlined_call_operand.hbm [shape: f32[2,4,4], index: 1, kind: output, shape index: {}]
  %s2 = sld [smem:[#allocation0]]
  $region49: #{tpu_custom_call.1} parent=0
    _
  %s4 = ssub.s32 1, %s2
  %s5 = scalar_select 0, %s4, %s2
  $region1: #{tpu_custom_call.1} parent=0
    #allocation2 [shape = 'u8[8192]{0}', space=vmem, size = 0x2000, scoped, tag = 'input window, operand 0']
    #allocation3 [shape = 's32[2]{0}', space=sflag, size = 0x8, scoped, tag = 'scoped memory for tpu_custom_call.1']
    #allocation4 [shape = 's32[2]{0}', space=sflag, size = 0x8, scoped, tag = 'scoped memory for tpu_custom_call.1']
    #allocation5 [shape = 'u8[4096]{0}', space=vmem, size = 0x1000, scoped, tag = 'output window, operand 0']
    %6 = vsyncpa [#allocation3], 0
    %s7 = scalar_lea.sflag [#allocation3], 1
    %8 = vsyncpa %s7, 0
    %9 = vsyncpa [#allocation4], 0
    %s10 = scalar_lea.sflag [#allocation4], 1
    %11 = vsyncpa %s10, 0
    loop: start=0, step=1, limit=4
    $region2: #{tpu_custom_call.1} parent=1 // loop_pre_header
      _
    $region3: #{tpu_custom_call.1} parent=1 // loop_header
      %s13 = sphi 0, %s17
      %p14 = scmp.ge.s32.totalorder %s13, 4
      %s20 = sphi 0, %s39
      %s21 = sphi 0, %s35
      %s22 = sphi 0, %s31
      %s23 = sphi 0, %s20
      %s24 = sphi 0, %s21
      %s25 = sphi 0, %s22
      %s26 = sphi 0, %s23
      %s27 = sphi 0, %s24
      %s28 = sphi 0, %s25
      %s46 = sphi 0, %s48
      %s49 = sphi 0, %s46
      %s50 = sphi 0, %s49
      %s66 = sphi 0, %s50
      %s72 = sphi 0, %s74
      %s75 = sphi 0, %s72
      %s76 = sphi 0, %s75
      %s92 = sphi 0, %s76
    $region4: #{tpu_custom_call.1} parent=1 // loop_header_branch
      %16 = sbr.rel (%p14) target = $region8
    $region5: #{tpu_custom_call.1} parent=1 // loop_body
      %s18 = ssub.s32 %s13, 1
      %s19 = ssub.s32 %s13, 2
      %s29 = sadd.s32 1, %s22
      %p30 = scmp.ge.s32.totalorder %s29, 1
      %s31 = scalar_select %p30, 0, %s29
      %s32 = sadd.s32 1, %s21
      %s33 = scalar_select %p30, %s32, %s21
      %p34 = scmp.ge.s32.totalorder %s33, 1
      %s35 = scalar_select %p34, 0, %s33
      %s36 = sadd.s32 1, %s20
      %s37 = scalar_select %p34, %s36, %s20
      %p38 = scmp.ge.s32.totalorder %s37, 2
      %s39 = scalar_select %p38, 0, %s37
      %s40 = sadd.s32 %s20, %s21
      %s41 = sadd.s32 %s39, %s35
      %s42 = ssub.s32 %s40, %s41
      %s43 = ssub.s32 %s22, %s31
      %s44 = sor.u32 %s42, %s43
      %p45 = scmp.eq.s32.totalorder %s44, 0
      %s47 = sadd.s32 %s46, 1
      %s48 = scalar_select %p45, %s46, %s47
      %p51 = pneg %p45
      %p52 = scmp.eq.s32.totalorder %s13, 1
      %p53 = por %p51, %p52
      %p54 = scmp.ne.s32.totalorder %s46, %s49
      %p55 = scmp.eq.s32.totalorder %s13, 0
      %p56 = por %p54, %p55
      %p57 = scmp.ne.s32.totalorder %s46, %s49
      %p58 = scmp.eq.s32.totalorder %s18, 1
      %p59 = por %p57, %p58
      %p60 = scmp.ne.s32.totalorder %s49, %s50
      %p61 = scmp.eq.s32.totalorder %s18, 0
      %p62 = por %p60, %p61
      %p63 = scmp.ne.s32.totalorder %s49, %s50
      %p64 = scmp.eq.s32.totalorder %s19, 1
      %p65 = por %p63, %p64
      %p67 = scmp.ne.s32.totalorder %s50, %s66
      %p68 = scmp.eq.s32.totalorder %s19, 0
      %p69 = por %p67, %p68
      %s70 = ssub.s32 %s20, %s39
      %p71 = scmp.eq.s32.totalorder %s70, 0
      %s73 = sadd.s32 %s72, 1
      %s74 = scalar_select %p71, %s72, %s73
      %p77 = pneg %p71
      %p78 = scmp.eq.s32.totalorder %s13, 1
      %p79 = por %p77, %p78
      %p80 = scmp.ne.s32.totalorder %s72, %s75
      %p81 = scmp.eq.s32.totalorder %s13, 0
      %p82 = por %p80, %p81
      %p83 = scmp.ne.s32.totalorder %s72, %s75
      %p84 = scmp.eq.s32.totalorder %s18, 1
      %p85 = por %p83, %p84
      %p86 = scmp.ne.s32.totalorder %s75, %s76
      %p87 = scmp.eq.s32.totalorder %s18, 0
      %p88 = por %p86, %p87
      %p89 = scmp.ne.s32.totalorder %s75, %s76
      %p90 = scmp.eq.s32.totalorder %s19, 1
      %p91 = por %p89, %p90
      %p93 = scmp.ne.s32.totalorder %s76, %s92
      %p94 = scmp.eq.s32.totalorder %s19, 0
      %p95 = por %p93, %p94
      %p96 = scmp.le.s32.totalorder 1, %s13
      %p97 = scmp.lt.s32.totalorder %s13, 3
      %p98 = pnand %p96, %p97
      %p99 = pneg %p98
      // Predicated region
      $region9: #{tpu_custom_call.1} parent=5 // pred_check
        _
      $region10: #{tpu_custom_call.1} parent=5 // pred_check_branch
        %101 = sbr.rel (%p98) target = $region12
      $region11: #{tpu_custom_call.1} parent=5 // pred_region
        %s102 = ssub.s32 %s13, 1
      $region12: #{tpu_custom_call.1} parent=5 // pred_fallthru
        _
      %p103 = scmp.lt.s32.totalorder %s13, 2
      // Predicated region
      $region13: #{tpu_custom_call.1} parent=5 // pred_check
        %p104 = pneg %p103
      $region14: #{tpu_custom_call.1} parent=5 // pred_check_branch
        %106 = sbr.rel (%p104) target = $region16
      $region15: #{tpu_custom_call.1} parent=5 // pred_region
        // Predicated region
        $region17: #{tpu_custom_call.1} parent=15 // pred_check
          %p107 = pneg %p56
        $region18: #{tpu_custom_call.1} parent=15 // pred_check_branch
          %109 = sbr.rel (%p107) target = $region20
        $region19: #{tpu_custom_call.1} parent=15 // pred_region
          %s110 = sand.u32 %s46, 1
          %s111 = scalar_lea.sflag [#allocation3], %s110
          %s112 = sand.u32 %s46, 1
          %s113 = smul.addr %s112, 8
          %s114 = scalar_lea.vmem [#allocation2], %s113
          %s115 = sadd.s32 %s20, %s21
          %s116 = smul.u32 2, %s22
          %s118 = ssub.s32 128, 128
          %119 = vsyncadd %s111, %s118
          %s120 = smul.addr %s115, 2
          %s121 = sadd.s32 %s116, %s120
          %s122 = smul.addr %s121, 64
          %s123 = scalar_lea.hbm %s0, %s122
          %s125 = sshll.u32 %s114, 4
          %s126 = int_to_ptr.vmem [resolvable:$true] %s125
          %128 = dma.hbm_to_vmem [thread:$0]  %s123, 128, %s126, %s111
        $region20: #{tpu_custom_call.1} parent=15 // pred_fallthru
          _
      $region16: #{tpu_custom_call.1} parent=5 // pred_fallthru
        _
      %p129 = scmp.le.s32.totalorder 1, %s13
      %p130 = scmp.lt.s32.totalorder %s13, 3
      %p131 = pnand %p129, %p130
      %p132 = pneg %p131
      // Predicated region
      $region21: #{tpu_custom_call.1} parent=5 // pred_check
        _
      $region22: #{tpu_custom_call.1} parent=5 // pred_check_branch
        %134 = sbr.rel (%p131) target = $region24
      $region23: #{tpu_custom_call.1} parent=5 // pred_region
        %s135 = ssub.s32 %s13, 1
        %s136 = sand.u32 %s49, 1
        %s137 = scalar_lea.sflag [#allocation3], %s136
        %s138 = sand.u32 %s49, 1
        %s139 = smul.addr %s138, 8
        %s140 = scalar_lea.vmem [#allocation2], %s139
        // Predicated region
        $region25: #{tpu_custom_call.1} parent=23 // pred_check
          %p141 = pneg %p62
        $region26: #{tpu_custom_call.1} parent=23 // pred_check_branch
          %143 = sbr.rel (%p141) target = $region28
        $region27: #{tpu_custom_call.1} parent=23 // pred_region
          %144 = dma.done %s137, 128
        $region28: #{tpu_custom_call.1} parent=23 // pred_fallthru
          _
        %s145 = sand.u32 %s49, 1
        %s146 = scalar_lea.sflag [#allocation3], %s145
        %s147 = sand.u32 %s49, 1
        %s148 = smul.addr %s147, 8
        %s149 = scalar_lea.vmem [#allocation2], %s148
        %p150 = pneg %p62
        %p151 = pneg %p59
        %p152 = pneg %p88
        %p153 = pneg %p85
        %s154 = sand.u32 %s75, 1
        %s155 = scalar_lea.sflag [#allocation4], %s154
        %s156 = sand.u32 %s75, 1
        %s157 = smul.addr %s156, 4
        %s158 = scalar_lea.vmem [#allocation5], %s157
        %s159 = sadd.s32 %s23, %s24
        %s160 = smul.u32 2, %s25
        %p161 = scmp.eq.s32.totalorder %s24, 0
        %p162 = scmp.eq.s32.totalorder %s25, 0
        %p163 = pnand %p161, %p162
        %p164 = pneg %p163
        // Predicated region
        $region29: #{tpu_custom_call.1} parent=23 // pred_check
          _
        $region30: #{tpu_custom_call.1} parent=23 // pred_check_branch
          %166 = sbr.rel (%p163) target = $region32
        $region31: #{tpu_custom_call.1} parent=23 // pred_region
          %vm167 = vcmask 27648
          %168 = vst.msk [vmem:[%s158] sm:$0xf] %vm167, 0.0
        $region32: #{tpu_custom_call.1} parent=23 // pred_fallthru
          _
        %v169 = vld [vmem:[%s140] sm:$0xff]
        %v170 = vld [vmem:[%s158] sm:$0xf]
        %v172 = vcombine.high %v169, %v169
        %174 = vmatprep.subr.mxu0 %v172
        %175 = vmatpush1.xpose.msra.mxu0 %v169
        %176 = vmatprep.subr.mxu0 0.0
        %177 = vmatpush1.xpose.msra.mxu0 0.0
        %178 = vmatprep.subr.mxu0 0.0
        %179 = vmatpush1.xpose.msra.mxu0 0.0
        %180 = vmatprep.subr.mxu0 0.0
        %181 = vmatpush1.xpose.msra.mxu0 0.0
        %182 = vmatprep.subr.mxu0 0.0
        %183 = vmatpush1.xpose.msra.mxu0 0.0
        %184 = vmatprep.subr.mxu0 0.0
        %185 = vmatpush1.xpose.msra.mxu0 0.0
        %186 = vmatprep.subr.mxu0 0.0
        %187 = vmatpush1.xpose.msra.mxu0 0.0
        %188 = vmatprep.subr.mxu0 0.0
        %189 = vmatpush1.xpose.msra.mxu0 0.0
        %190 = vmatprep.subr.mxu0 0.0
        %191 = vmatpush1.xpose.msra.mxu0 0.0
        %192 = vmatprep.subr.mxu0 0.0
        %193 = vmatpush1.xpose.msra.mxu0 0.0
        %194 = vmatprep.subr.mxu0 0.0
        %195 = vmatpush1.xpose.msra.mxu0 0.0
        %196 = vmatprep.subr.mxu0 0.0
        %197 = vmatpush1.xpose.msra.mxu0 0.0
        %198 = vmatprep.subr.mxu0 0.0
        %199 = vmatpush1.xpose.msra.mxu0 0.0
        %200 = vmatprep.subr.mxu0 0.0
        %201 = vmatpush1.xpose.msra.mxu0 0.0
        %202 = vmatprep.subr.mxu0 0.0
        %203 = vmatpush1.xpose.msra.mxu0 0.0
        %204 = vmatprep.subr.mxu0 0.0
        %205 = vmatpush1.xpose.msra.mxu0 0.0
        %206 = vmatprep.subr.mxu0 0.0
        %207 = vmatpush1.xpose.msra.mxu0 0.0
        %208 = vmatprep.subr.mxu0 0.0
        %209 = vmatpush1.xpose.msra.mxu0 0.0
        %210 = vmatprep.subr.mxu0 0.0
        %211 = vmatpush1.xpose.msra.mxu0 0.0
        %212 = vmatprep.subr.mxu0 0.0
        %213 = vmatpush1.xpose.msra.mxu0 0.0
        %214 = vmatprep.subr.mxu0 0.0
        %215 = vmatpush1.xpose.msra.mxu0 0.0
        %216 = vmatprep.subr.mxu0 0.0
        %217 = vmatpush1.xpose.msra.mxu0 0.0
        %218 = vmatprep.subr.mxu0 0.0
        %219 = vmatpush1.xpose.msra.mxu0 0.0
        %220 = vmatprep.subr.mxu0 0.0
        %221 = vmatpush1.xpose.msra.mxu0 0.0
        %222 = vmatprep.subr.mxu0 0.0
        %223 = vmatpush1.xpose.msra.mxu0 0.0
        %224 = vmatprep.subr.mxu0 0.0
        %225 = vmatpush1.xpose.msra.mxu0 0.0
        %226 = vmatprep.subr.mxu0 0.0
        %227 = vmatpush1.xpose.msra.mxu0 0.0
        %228 = vmatprep.subr.mxu0 0.0
        %229 = vmatpush1.xpose.msra.mxu0 0.0
        %230 = vmatprep.subr.mxu0 0.0
        %231 = vmatpush1.xpose.msra.mxu0 0.0
        %232 = vmatprep.subr.mxu0 0.0
        %233 = vmatpush1.xpose.msra.mxu0 0.0
        %234 = vmatprep.subr.mxu0 0.0
        %235 = vmatpush1.xpose.msra.mxu0 0.0
        %236 = vmatprep.subr.mxu0 0.0
        %237 = vmatpush1.xpose.msra.mxu0 0.0
        %238 = vmatprep.mubr.f32.mxu0 %v172
        %239 = vmatmul.mubr.f32.gmra.mrb[0].mxu0 %v169
        %v240 = vpop.f32.mrb[0].mxu0
        %v241 = vadd.f32 0.0, %v240
        %v242 = vpop.f32.mrb[0].mxu0
        %243 = vdwg.mxu0
        %v244 = vadd.f32 %v170, %v241
        %vm245 = vcmask 27648
        %246 = vst.msk [vmem:[%s158] sm:$0xf] %vm245, %v244
        // Predicated region
        $region33: #{tpu_custom_call.1} parent=23 // pred_check
          _
        $region34: #{tpu_custom_call.1} parent=23 // pred_check_branch
          %248 = sbr.rel (%p163) target = $region36
        $region35: #{tpu_custom_call.1} parent=23 // pred_region
          %v249 = vld [vmem:[%s158] sm:$0xf]
          %v250 = vmul.f32 %v249, 0.00048828125
          %251 = vst.msk [vmem:[%s158] sm:$0xf] %vm245, %v250
        $region36: #{tpu_custom_call.1} parent=23 // pred_fallthru
          _
        %s252 = sand.u32 %s75, 1
        %s253 = scalar_lea.sflag [#allocation4], %s252
        %s254 = sand.u32 %s75, 1
        %s255 = smul.addr %s254, 4
        %s256 = scalar_lea.vmem [#allocation5], %s255
        // Predicated region
        $region37: #{tpu_custom_call.1} parent=23 // pred_check
          %p257 = pneg %p85
        $region38: #{tpu_custom_call.1} parent=23 // pred_check_branch
          %259 = sbr.rel (%p257) target = $region40
        $region39: #{tpu_custom_call.1} parent=23 // pred_region
          %s261 = ssub.s32 64, 64
          %262 = vsyncadd %s253, %s261
          %s263 = smul.addr %s23, 64
          %s264 = scalar_lea.hbm %s1, %s263
          %s266 = sshll.u32 %s256, 4
          %s267 = int_to_ptr.vmem [resolvable:$true] %s266
          %269 = dma.vmem_to_hbm [thread:$0]  %s267, 64, %s264, %s253
        $region40: #{tpu_custom_call.1} parent=23 // pred_fallthru
          _
      $region24: #{tpu_custom_call.1} parent=5 // pred_fallthru
        _
      %p270 = scmp.le.s32.totalorder 2, %s13
      // Predicated region
      $region41: #{tpu_custom_call.1} parent=5 // pred_check
        %p271 = pneg %p270
      $region42: #{tpu_custom_call.1} parent=5 // pred_check_branch
        %273 = sbr.rel (%p271) target = $region44
      $region43: #{tpu_custom_call.1} parent=5 // pred_region
        %s274 = ssub.s32 %s13, 2
        // Predicated region
        $region45: #{tpu_custom_call.1} parent=43 // pred_check
          %p275 = pneg %p91
        $region46: #{tpu_custom_call.1} parent=43 // pred_check_branch
          %277 = sbr.rel (%p275) target = $region48
        $region47: #{tpu_custom_call.1} parent=43 // pred_region
          %s278 = sand.u32 %s76, 1
          %s279 = scalar_lea.sflag [#allocation4], %s278
          %s280 = sand.u32 %s76, 1
          %s281 = smul.addr %s280, 4
          %s282 = scalar_lea.vmem [#allocation5], %s281
          %283 = dma.done %s279, 64
        $region48: #{tpu_custom_call.1} parent=43 // pred_fallthru
          _
      $region44: #{tpu_custom_call.1} parent=5 // pred_fallthru
        _
    $region6: #{tpu_custom_call.1} parent=1 // loop_footer
      %s17 = sadd.s32 1, %s13
    $region7: #{tpu_custom_call.1} parent=1 // loop_footer_branch
      %12 = sbr.rel target = $region3
    $region8: #{tpu_custom_call.1} parent=1 // loop_exit
      _
    %284 = vsyncpa [#allocation3], 1
    %s285 = scalar_lea.sflag [#allocation3], 1
    %286 = vsyncpa %s285, 1
    %287 = vsyncpa [#allocation4], 1
    %s288 = scalar_lea.sflag [#allocation4], 1
    %289 = vsyncpa %s288, 1

</llo_original>
